<compile_context>
chip_gen: v6e
topology: v6e:2x2x1
jax: 0.10.0
libtpu: 0.0.40
codegen_flags: <defaults>
</compile_context>

<pallas_src>
import functools

import jax
import jax.numpy as jnp
from jax.experimental import pallas as pl
from jax.experimental.pallas import tpu as pltpu


def _cdiv(a, b):
    return -(-a // b)


def _round_up(a, b):
    return _cdiv(a, b) * b


def _vmem_capacity_bytes():
    """Per-core VMEM capacity; falls back to the smallest generation (v7x, 64 MiB)."""
    try:
        info = pltpu.get_tpu_info()
        cap = getattr(info, "vmem_capacity_bytes", None)
        if cap:
            return int(cap)
    except Exception:
        pass
    return 64 * 1024 * 1024


def _se_kernel(x_ref, w1_ref, b1_ref, w2_ref, b2_ref, o_ref, acc_ref,
               *, seq_len, l_tile, needs_mask):
    """Grid = (N tiles, L tiles); L (reduction) is innermost & 'arbitrary'.

    x_ref:   (TN, C_in, TL)  -- NCL, L on the lane axis.
    acc_ref: (TN, C_in) f32 running sum over L (VMEM scratch, grid-persistent).
    """
    l = pl.program_id(1)
    last = pl.num_programs(1) - 1

    @pl.when(l == 0)
    def _init():
        acc_ref[...] = jnp.zeros_like(acc_ref)

    if needs_mask:
        # Ragged L tail: out-of-bounds lanes of the final tile hold garbage
        # (no wrapper padding) -> mask them with an iota lane mask before the
        # partial sum.  Only the last step pays the select.
        @pl.when(l == last)
        def _tail_sum():
            lane = jax.lax.broadcasted_iota(jnp.int32, x_ref.shape, 2)
            valid = (l * l_tile + lane) < seq_len
            xv = jnp.where(valid, x_ref[...], jnp.array(0, dtype=x_ref.dtype))
            acc_ref[...] += jnp.sum(xv, axis=-1, dtype=jnp.float32)

        @pl.when(l != last)
        def _body_sum():
            acc_ref[...] += jnp.sum(x_ref[...], axis=-1, dtype=jnp.float32)
    else:
        # Upcast on the fly; no full f32 copy of the tile.
        acc_ref[...] += jnp.sum(x_ref[...], axis=-1, dtype=jnp.float32)

    @pl.when(l == last)
    def _finalize():
        pooled = acc_ref[...] * (1.0 / seq_len)                        # (TN, C_in)
        h = jnp.dot(pooled, w1_ref[...],
                    preferred_element_type=jnp.float32) + b1_ref[...]  # (TN, C_red)
        h = jnp.maximum(h, 0.0)
        o = jnp.dot(h, w2_ref[...],
                    preferred_element_type=jnp.float32) + b2_ref[...]  # (TN, C_out)
        o_ref[...] = jax.nn.sigmoid(o).astype(o_ref.dtype)             # exp -> EUP


def squeeze_excitation(x, w1, b1, w2, b2, *, l_tile=None, x_buffers=None):
    """x: (N, C_in, L); w1: (C_red, C_in, 1); b1: (C_red,);
       w2: (C_out, C_red, 1); b2: (C_out,). Returns (N, C_out, 1).

    l_tile:    optional manual L-tile override (rounded to a multiple of 128).
    x_buffers: optional pipeline depth for the x stream (e.g. 3 on v7x); the
               default BlockSpec double-buffering is used when None.
    """
    N, C_in, L = x.shape
    C_red = w1.shape[0]
    C_out = w2.shape[0]
    itemsize = jnp.dtype(x.dtype).itemsize

    # kernel_size=1 Conv1d weights -> plain matmul operands (tiny; epilogue noise).
    w1_t = jnp.transpose(w1[..., 0], (1, 0)).astype(jnp.float32)   # (C_in, C_red)
    w2_t = jnp.transpose(w2[..., 0], (1, 0)).astype(jnp.float32)   # (C_red, C_out)
    b1_2d = b1.reshape(1, C_red).astype(jnp.float32)
    b2_2d = b2.reshape(1, C_out).astype(jnp.float32)

    # Generation-scaled VMEM budget: ~vmem/5 per x buffer (double-buffered by the
    # pipeline), capped at 24 MiB.  v7x (64 MiB VMEM/TC) -> ~12.8 MiB tiles,
    # v5e/v6e (128 MiB) -> 24 MiB tiles.  vmem_limit stays below physical VMEM.
    vmem_cap = _vmem_capacity_bytes()
    budget = max(2 << 20, min(vmem_cap // 5, 24 << 20))
    vmem_limit = int(min((vmem_cap * 3) // 4, 96 << 20))

    # ---- L tile (lane axis): multiple of 128, or the full dim ----------------
    tn_min = min(N, 8)
    row_bytes = C_in * L * itemsize
    if l_tile is not None:
        TL = L if l_tile >= L else max(128, (min(l_tile, L) // 128) * 128)
    elif tn_min * row_bytes <= budget:
        TL = L
    else:
        max_tl = budget // (tn_min * C_in * itemsize)
        TL = max(128, (max_tl // 128) * 128)
    TL = min(TL, L)
    grid_l = _cdiv(L, TL)
    needs_mask = (L % TL) != 0

    # ---- N tile (leading axis, no lane/sublane constraint) -------------------
    if N <= 8:
        TN = N
    else:
        rows_budget = max(8, budget // (C_in * TL * itemsize))
        TN = min((rows_budget // 8) * 8, _round_up(N, 8))
        # Megacore (v7x): keep >=2 batch tiles so the 2nd TensorCore has work.
        tn_cap = max(8, _round_up(_cdiv(N, 2), 8))
        TN = max(8, min(TN, tn_cap))
    grid_n = _cdiv(N, TN)
    Np = grid_n * TN          # output is allocated padded (tiny) and sliced.

    x_index_map = lambda n, l: (n, 0, l)
    x_spec = pl.BlockSpec((TN, C_in, TL), x_index_map)
    if x_buffers is not None and x_buffers > 2 and grid_l >= x_buffers:
        tile_bytes = TN * C_in * TL * itemsize
        if x_buffers * tile_bytes + (4 << 20) <= vmem_limit:
            try:
                x_spec = pl.BlockSpec((TN, C_in, TL), x_index_map,
                                      pipeline_mode=pl.Buffered(x_buffers))
            except Exception:
                pass   # older JAX: fall back to default double-buffering

    def const_spec(shape):
        # Same block every grid step -> stays VMEM-resident (no re-DMA).
        return pl.BlockSpec(shape, lambda n, l: (0, 0))

    kernel = functools.partial(_se_kernel, seq_len=L, l_tile=TL,
                               needs_mask=needs_mask)

    out = pl.pallas_call(
        kernel,
        out_shape=jax.ShapeDtypeStruct((Np, C_out), x.dtype),
        grid_spec=pltpu.PrefetchScalarGridSpec(
            num_scalar_prefetch=0,
            grid=(grid_n, grid_l),
            in_specs=[
                x_spec,
                const_spec((C_in, C_red)),
                const_spec((1, C_red)),
                const_spec((C_red, C_out)),
                const_spec((1, C_out)),
            ],
            out_specs=pl.BlockSpec((TN, C_out), lambda n, l: (n, 0)),
            scratch_shapes=[pltpu.VMEM((TN, C_in), jnp.float32)],
        ),
        compiler_params=pltpu.CompilerParams(
            # N-tile axis may be split across v7x's two TensorCores; L is the
            # reduction axis (resident accumulator) -> must stay "arbitrary".
            dimension_semantics=("parallel", "arbitrary"),
            vmem_limit_bytes=vmem_limit,
        ),
    )(x, w1_t, b1_2d, w2_t, b2_2d)

    return out[:N, :, None]   # (N, C_out, 1); drop any garbage batch-tail rows


if __name__ == "__main__":
    key = jax.random.PRNGKey(0)

    def make_params(k, c_in, c_out, reduction):
        c_red = c_out // reduction
        kw1, kb1, kw2, kb2 = jax.random.split(k, 4)
        w1 = jax.random.normal(kw1, (c_red, c_in, 1), jnp.float32) * 0.1
        b1 = jax.random.normal(kb1, (c_red,), jnp.float32) * 0.1
        w2 = jax.random.normal(kw2, (c_out, c_red, 1), jnp.float32) * 0.1
        b2 = jax.random.normal(kb2, (c_out,), jnp.float32) * 0.1
        return w1, b1, w2, b2

    def reference(x, w1, b1, w2, b2):
        pooled = jnp.mean(x, axis=-1)
        h = jnp.maximum(pooled @ w1[..., 0].T + b1, 0.0)
        o = jax.nn.sigmoid(h @ w2[..., 0].T + b2)
        return o[..., None]

    # --- Test 1: small module-consistent shapes, single tile ------------------
    k1, k2, key = jax.random.split(key, 3)
    N, C_in, C_out, L, red = 4, 32, 32, 16, 4
    x = jax.random.normal(k1, (N, C_in, L), jnp.float32)
    params = make_params(k2, C_in, C_out, red)
    out = jax.block_until_ready(squeeze_excitation(x, *params))
    ref = reference(x, *params)
    assert out.shape == (N, C_out, 1), out.shape
    assert jnp.allclose(out, ref, atol=1e-5, rtol=1e-5), \
        float(jnp.max(jnp.abs(out - ref)))

    # --- Test 2: streaming path with ragged N and ragged L (in-kernel mask) ---
    k3, k4, _ = jax.random.split(key, 3)
    N, C_in, C_out, L, red = 9, 64, 64, 400, 4
    x = jax.random.normal(k3, (N, C_in, L), jnp.float32)
    params = make_params(k4, C_in, C_out, red)
    out = jax.block_until_ready(squeeze_excitation(x, *params, l_tile=128))
    ref = reference(x, *params)
    assert out.shape == (N, C_out, 1), out.shape
    assert jnp.allclose(out, ref, atol=1e-5, rtol=1e-5), \
        float(jnp.max(jnp.abs(out - ref)))

    print("KERNEL_OK")
</pallas_src>

<mosaic_0001>
module attributes {stable_mosaic.version = 11 : i64} {
  func.func @_se_kernel(%arg0: i32, %arg1: i32, %arg2: memref<4x32x16xf32, #tpu.memory_space<vmem>>, %arg3: memref<32x8xf32, #tpu.memory_space<vmem>>, %arg4: memref<1x8xf32, #tpu.memory_space<vmem>>, %arg5: memref<8x32xf32, #tpu.memory_space<vmem>>, %arg6: memref<1x32xf32, #tpu.memory_space<vmem>>, %arg7: memref<4x32xf32, #tpu.memory_space<vmem>>, %arg8: memref<4x32xf32, #tpu.memory_space<vmem>>) attributes {dimension_semantics = [#tpu.dimension_semantics<parallel>, #tpu.dimension_semantics<arbitrary>], iteration_bounds = array<i64: 1, 1>, scalar_prefetch = 0 : i64, scratch_operands = 1 : i64, tpu.core_type = #tpu.core_type<tc>, window_params = [{transform_indices = @transform_0, window_bounds = array<i64: 4, 32, 16>}, {pipeline_mode = #tpu.pipeline_mode<synchronous>, transform_indices = @transform_1, window_bounds = array<i64: 32, 8>}, {pipeline_mode = #tpu.pipeline_mode<synchronous>, transform_indices = @transform_2, window_bounds = array<i64: 1, 8>}, {pipeline_mode = #tpu.pipeline_mode<synchronous>, transform_indices = @transform_3, window_bounds = array<i64: 8, 32>}, {pipeline_mode = #tpu.pipeline_mode<synchronous>, transform_indices = @transform_4, window_bounds = array<i64: 1, 32>}, {transform_indices = @transform_5, window_bounds = array<i64: 4, 32>}]} {
    %c0_i32 = arith.constant 0 : i32
    %0 = arith.cmpi eq, %arg1, %c0_i32 : i32
    %1 = arith.extui %0 : i1 to i32
    %c0_i32_0 = arith.constant 0 : i32
    %2 = arith.cmpi ne, %1, %c0_i32_0 : i32
    scf.if %2 {
      %cst_9 = arith.constant 0.000000e+00 : f32
      %11 = vector.broadcast %cst_9 : f32 to vector<4x32xf32>
      %c0_10 = arith.constant 0 : index
      %c0_11 = arith.constant 0 : index
      %12 = vector.load %arg8[%c0_10, %c0_11] : memref<4x32xf32, #tpu.memory_space<vmem>>, vector<4x32xf32>
      tpu.vector_store %arg8[%c0_10, %c0_11], %11 {strides = array<i32>} : memref<4x32xf32, #tpu.memory_space<vmem>>, vector<4x32xf32>,
    } else {
    }
    %c0 = arith.constant 0 : index
    %c0_1 = arith.constant 0 : index
    %3 = vector.load %arg8[%c0, %c0_1] : memref<4x32xf32, #tpu.memory_space<vmem>>, vector<4x32xf32>
    %c0_2 = arith.constant 0 : index
    %c0_3 = arith.constant 0 : index
    %c0_4 = arith.constant 0 : index
    %4 = vector.load %arg2[%c0_2, %c0_3, %c0_4] : memref<4x32x16xf32, #tpu.memory_space<vmem>>, vector<4x32x16xf32>
    %cst = arith.constant dense<0.000000e+00> : vector<4x32xf32>
    %5 = vector.multi_reduction <add>, %4, %cst [2] : vector<4x32x16xf32> to vector<4x32xf32>
    %6 = arith.addf %3, %5 : vector<4x32xf32>
    %c0_5 = arith.constant 0 : index
    %c0_6 = arith.constant 0 : index
    %7 = vector.load %arg8[%c0_5, %c0_6] : memref<4x32xf32, #tpu.memory_space<vmem>>, vector<4x32xf32>
    tpu.vector_store %arg8[%c0_5, %c0_6], %6 {strides = array<i32>} : memref<4x32xf32, #tpu.memory_space<vmem>>, vector<4x32xf32>,
    %c0_i32_7 = arith.constant 0 : i32
    %8 = arith.cmpi eq, %arg1, %c0_i32_7 : i32
    %9 = arith.extui %8 : i1 to i32
    %c0_i32_8 = arith.constant 0 : i32
    %10 = arith.cmpi ne, %9, %c0_i32_8 : i32
    scf.if %10 {
      %c0_9 = arith.constant 0 : index
      %c0_10 = arith.constant 0 : index
      %11 = vector.load %arg8[%c0_9, %c0_10] : memref<4x32xf32, #tpu.memory_space<vmem>>, vector<4x32xf32>
      %cst_11 = arith.constant 6.250000e-02 : f32
      %12 = vector.broadcast %cst_11 : f32 to vector<4x32xf32>
      %13 = arith.mulf %11, %12 : vector<4x32xf32>
      %c0_12 = arith.constant 0 : index
      %c0_13 = arith.constant 0 : index
      %14 = vector.load %arg3[%c0_12, %c0_13] : memref<32x8xf32, #tpu.memory_space<vmem>>, vector<32x8xf32>
      %cst_14 = arith.constant dense<0.000000e+00> : vector<4x8xf32>
      %15 = tpu.matmul %13, %14, %cst_14 {dimension_numbers = #tpu.dot_dimension_numbers<[1], [0], [0], [1], [0, 0, 1, 1], [], []>} : vector<4x32xf32>, vector<32x8xf32>, vector<4x8xf32> -> vector<4x8xf32>
      %c0_15 = arith.constant 0 : index
      %c0_16 = arith.constant 0 : index
      %16 = vector.load %arg4[%c0_15, %c0_16] : memref<1x8xf32, #tpu.memory_space<vmem>>, vector<1x8xf32>
      %17 = vector.broadcast %16 : vector<1x8xf32> to vector<4x8xf32>
      %18 = arith.addf %15, %17 : vector<4x8xf32>
      %cst_17 = arith.constant 0.000000e+00 : f32
      %19 = vector.broadcast %cst_17 : f32 to vector<4x8xf32>
      %20 = arith.maximumf %18, %19 : vector<4x8xf32>
      %c0_18 = arith.constant 0 : index
      %c0_19 = arith.constant 0 : index
      %21 = vector.load %arg5[%c0_18, %c0_19] : memref<8x32xf32, #tpu.memory_space<vmem>>, vector<8x32xf32>
      %cst_20 = arith.constant dense<0.000000e+00> : vector<4x32xf32>
      %22 = tpu.matmul %20, %21, %cst_20 {dimension_numbers = #tpu.dot_dimension_numbers<[1], [0], [0], [1], [0, 0, 1, 1], [], []>} : vector<4x8xf32>, vector<8x32xf32>, vector<4x32xf32> -> vector<4x32xf32>
      %c0_21 = arith.constant 0 : index
      %c0_22 = arith.constant 0 : index
      %23 = vector.load %arg6[%c0_21, %c0_22] : memref<1x32xf32, #tpu.memory_space<vmem>>, vector<1x32xf32>
      %24 = vector.broadcast %23 : vector<1x32xf32> to vector<4x32xf32>
      %25 = arith.addf %22, %24 : vector<4x32xf32>
      %26 = arith.negf %25 : vector<4x32xf32>
      %27 = math.exp %26 : vector<4x32xf32>
      %cst_23 = arith.constant 1.000000e+00 : f32
      %28 = vector.broadcast %cst_23 : f32 to vector<4x32xf32>
      %29 = arith.addf %28, %27 : vector<4x32xf32>
      %30 = arith.divf %28, %29 : vector<4x32xf32>
      %c0_24 = arith.constant 0 : index
      %c0_25 = arith.constant 0 : index
      %31 = vector.load %arg7[%c0_24, %c0_25] : memref<4x32xf32, #tpu.memory_space<vmem>>, vector<4x32xf32>
      tpu.vector_store %arg7[%c0_24, %c0_25], %30 {strides = array<i32>} : memref<4x32xf32, #tpu.memory_space<vmem>>, vector<4x32xf32>,
    } else {
    }
    return
  }
  func.func @transform_0(%arg0: i32, %arg1: i32) -> (i32, i32, i32) {
    %c0_i32 = arith.constant 0 : i32
    %c0_i32_0 = arith.constant 0 : i32
    return %arg0, %c0_i32, %arg1 : i32, i32, i32
  }
  func.func @transform_1(%arg0: i32, %arg1: i32) -> (i32, i32) {
    %c0_i32 = arith.constant 0 : i32
    %c0_i32_0 = arith.constant 0 : i32
    %c0_i32_1 = arith.constant 0 : i32
    return %c0_i32, %c0_i32_0 : i32, i32
  }
  func.func @transform_2(%arg0: i32, %arg1: i32) -> (i32, i32) {
    %c0_i32 = arith.constant 0 : i32
    %c0_i32_0 = arith.constant 0 : i32
    %c0_i32_1 = arith.constant 0 : i32
    return %c0_i32, %c0_i32_0 : i32, i32
  }
  func.func @transform_3(%arg0: i32, %arg1: i32) -> (i32, i32) {
    %c0_i32 = arith.constant 0 : i32
    %c0_i32_0 = arith.constant 0 : i32
    %c0_i32_1 = arith.constant 0 : i32
    return %c0_i32, %c0_i32_0 : i32, i32
  }
  func.func @transform_4(%arg0: i32, %arg1: i32) -> (i32, i32) {
    %c0_i32 = arith.constant 0 : i32
    %c0_i32_0 = arith.constant 0 : i32
    %c0_i32_1 = arith.constant 0 : i32
    return %c0_i32, %c0_i32_0 : i32, i32
  }
  func.func @transform_5(%arg0: i32, %arg1: i32) -> (i32, i32) {
    %c0_i32 = arith.constant 0 : i32
    %c0_i32_0 = arith.constant 0 : i32
    return %arg0, %c0_i32 : i32, i32
  }
}

</mosaic_0001>

<llo_original>
// kernel: tpu_custom_call.1
$region0: #{tpu_custom_call.1}
  #allocation0 [shape = 'u32[]', space=smem, size = 0x4, offset = 0x4, fixed_abs, tag = 'smem constant byte address 0x4 - core index']
  #allocation1 [shape = 'u32[144,128]{1,0:T(1,128)}', space=vmem, size = 0x12000, scoped, tag = 'internal scratch']
  #allocation2 [shape = 'f32[4,32]{1,0:T(4,128)}', space=vmem, size = 0x800, scoped, tag = 'scratch operand']
  %s0 = inlined_call_operand.vmem [shape: f32[4,32,16], index: 0, kind: input, shape index: {}]
  %s1 = inlined_call_operand.vmem [shape: f32[32,8], index: 1, kind: input, shape index: {}]
  %s2 = inlined_call_operand.vmem [shape: f32[1,8], index: 2, kind: input, shape index: {}]
  %s3 = inlined_call_operand.vmem [shape: f32[8,32], index: 3, kind: input, shape index: {}]
  %s4 = inlined_call_operand.vmem [shape: f32[1,32], index: 4, kind: input, shape index: {}]
  %s5 = inlined_call_operand.hbm [shape: f32[4,32], index: 5, kind: output, shape index: {}]
  %s6 = sld [smem:[#allocation0]]
  $region38: #{tpu_custom_call.1} parent=0
    _
  %s8 = ssub.s32 1, %s6
  %s9 = scalar_select 0, %s8, %s6
  $region1: #{tpu_custom_call.1} parent=0
    #allocation3 [shape = 'u8[2048]{0}', space=vmem, size = 0x800, scoped, tag = 'output window, operand 0, single buffered']
    #allocation4 [shape = 's32[1]{0}', space=sflag, size = 0x4, scoped, tag = 'scoped memory for tpu_custom_call.1']
    %10 = vsyncpa [#allocation4], 0
    // Predicated region
    $region2: #{tpu_custom_call.1} parent=1 // pred_check
      _
    $region3: #{tpu_custom_call.1} parent=1 // pred_check_branch
      %12 = sbr.rel (0) target = $region5
    $region4: #{tpu_custom_call.1} parent=1 // pred_region
      _
    $region5: #{tpu_custom_call.1} parent=1 // pred_fallthru
      _
    // Predicated region
    $region6: #{tpu_custom_call.1} parent=1 // pred_check
      _
    $region7: #{tpu_custom_call.1} parent=1 // pred_check_branch
      %14 = sbr.rel (0) target = $region9
    $region8: #{tpu_custom_call.1} parent=1 // pred_region
      _
    $region9: #{tpu_custom_call.1} parent=1 // pred_fallthru
      _
    // Predicated region
    $region10: #{tpu_custom_call.1} parent=1 // pred_check
      _
    $region11: #{tpu_custom_call.1} parent=1 // pred_check_branch
      %16 = sbr.rel (0) target = $region13
    $region12: #{tpu_custom_call.1} parent=1 // pred_region
      _
    $region13: #{tpu_custom_call.1} parent=1 // pred_fallthru
      _
    // Predicated region
    $region14: #{tpu_custom_call.1} parent=1 // pred_check
      _
    $region15: #{tpu_custom_call.1} parent=1 // pred_check_branch
      %18 = sbr.rel (0) target = $region17
    $region16: #{tpu_custom_call.1} parent=1 // pred_region
      _
    $region17: #{tpu_custom_call.1} parent=1 // pred_fallthru
      _
    // Predicated region
    $region18: #{tpu_custom_call.1} parent=1 // pred_check
      _
    $region19: #{tpu_custom_call.1} parent=1 // pred_check_branch
      %20 = sbr.rel (0) target = $region21
    $region20: #{tpu_custom_call.1} parent=1 // pred_region
      _
    $region21: #{tpu_custom_call.1} parent=1 // pred_fallthru
      _
    %p21 = scmp.eq.s32.totalorder 0, 0
    // Predicated region
    $region22: #{tpu_custom_call.1} parent=1 // pred_check
      %p22 = pneg %p21
    $region23: #{tpu_custom_call.1} parent=1 // pred_check_branch
      %24 = sbr.rel (%p22) target = $region25
    $region24: #{tpu_custom_call.1} parent=1 // pred_region
      %vm25 = vcmask 257024
      %26 = vst.msk [vmem:[#allocation2] sm:$0xf] %vm25, 0.0
    $region25: #{tpu_custom_call.1} parent=1 // pred_fallthru
      _
    %v27 = vld [vmem:[#allocation2] sm:$0xf]
    %v28 = vld [vmem:[%s0] sm:$0xff]
    %v29 = vld [vmem:[%s0 + $0x8] sm:$0xff]
    %v30 = vld [vmem:[%s0 + $0x10] sm:$0xff]
    %v31 = vld [vmem:[%s0 + $0x18] sm:$0xff]
    %v32 = vld [vmem:[%s0 + $0x20] sm:$0xff]
    %v33 = vld [vmem:[%s0 + $0x28] sm:$0xff]
    %v34 = vld [vmem:[%s0 + $0x30] sm:$0xff]
    %v35 = vld [vmem:[%s0 + $0x38] sm:$0xff]
    %v36 = vld [vmem:[%s0 + $0x40] sm:$0xff]
    %v37 = vld [vmem:[%s0 + $0x48] sm:$0xff]
    %v38 = vld [vmem:[%s0 + $0x50] sm:$0xff]
    %v39 = vld [vmem:[%s0 + $0x58] sm:$0xff]
    %v40 = vld [vmem:[%s0 + $0x60] sm:$0xff]
    %v41 = vld [vmem:[%s0 + $0x68] sm:$0xff]
    %v42 = vld [vmem:[%s0 + $0x70] sm:$0xff]
    %v43 = vld [vmem:[%s0 + $0x78] sm:$0xff]
    %vm44 = vcmask 130048
    %v45 = vsel %vm44, %v28, 0.0
    %46 = vadd.xlane.f32.xlu0 %v45
    %v47 = vpop.xlane.xlu0 %46
    %v48 = vsel %vm44, %v29, 0.0
    %49 = vadd.xlane.f32.xlu0 %v48
    %v50 = vpop.xlane.xlu0 %49
    %v51 = vsel %vm44, %v30, 0.0
    %52 = vadd.xlane.f32.xlu0 %v51
    %v53 = vpop.xlane.xlu0 %52
    %v54 = vsel %vm44, %v31, 0.0
    %55 = vadd.xlane.f32.xlu0 %v54
    %v56 = vpop.xlane.xlu0 %55
    %v57 = vsel %vm44, %v32, 0.0
    %58 = vadd.xlane.f32.xlu0 %v57
    %v59 = vpop.xlane.xlu0 %58
    %v60 = vsel %vm44, %v33, 0.0
    %61 = vadd.xlane.f32.xlu0 %v60
    %v62 = vpop.xlane.xlu0 %61
    %v63 = vsel %vm44, %v34, 0.0
    %64 = vadd.xlane.f32.xlu0 %v63
    %v65 = vpop.xlane.xlu0 %64
    %v66 = vsel %vm44, %v35, 0.0
    %67 = vadd.xlane.f32.xlu0 %v66
    %v68 = vpop.xlane.xlu0 %67
    %v69 = vsel %vm44, %v36, 0.0
    %70 = vadd.xlane.f32.xlu0 %v69
    %v71 = vpop.xlane.xlu0 %70
    %v72 = vsel %vm44, %v37, 0.0
    %73 = vadd.xlane.f32.xlu0 %v72
    %v74 = vpop.xlane.xlu0 %73
    %v75 = vsel %vm44, %v38, 0.0
    %76 = vadd.xlane.f32.xlu0 %v75
    %v77 = vpop.xlane.xlu0 %76
    %v78 = vsel %vm44, %v39, 0.0
    %79 = vadd.xlane.f32.xlu0 %v78
    %v80 = vpop.xlane.xlu0 %79
    %v81 = vsel %vm44, %v40, 0.0
    %82 = vadd.xlane.f32.xlu0 %v81
    %v83 = vpop.xlane.xlu0 %82
    %v84 = vsel %vm44, %v41, 0.0
    %85 = vadd.xlane.f32.xlu0 %v84
    %v86 = vpop.xlane.xlu0 %85
    %v87 = vsel %vm44, %v42, 0.0
    %88 = vadd.xlane.f32.xlu0 %v87
    %v89 = vpop.xlane.xlu0 %88
    %v90 = vsel %vm44, %v43, 0.0
    %91 = vadd.xlane.f32.xlu0 %v90
    %v92 = vpop.xlane.xlu0 %91
    %v109 = vlaneseq
    %v110 = vand.u32 %v109, 127
    %v111 = vlaneseq
    %v112 = vshrl.u32 %v111, 7
    %v113 = vsub.s32 %v110, %v112
    %v114 = vrot.slane %v47, %v113
    %v115 = vadd.s32 %v110, 4294967288
    %v116 = vlaneseq
    %v117 = vshrl.u32 %v116, 7
    %v118 = vsub.s32 %v115, %v117
    %v119 = vrot.slane %v50, %v118
    %vm120 = vcmask 130112
    %v121 = vsel %vm120, %v119, %v114
    %v122 = vadd.s32 %v110, 4294967280
    %v123 = vlaneseq
    %v124 = vshrl.u32 %v123, 7
    %v125 = vsub.s32 %v122, %v124
    %v126 = vrot.slane %v53, %v125
    %vm127 = vcmask 195712
    %v128 = vsel %vm127, %v126, %v121
    %v129 = vadd.s32 %v110, 4294967272
    %v130 = vlaneseq
    %v131 = vshrl.u32 %v130, 7
    %v132 = vsub.s32 %v129, %v131
    %v133 = vrot.slane %v56, %v132
    %vm134 = vcmask 261312
    %v135 = vsel %vm134, %v133, %v128
    %v136 = vlaneseq
    %v137 = vshrl.u32 %v136, 7
    %v138 = vsub.s32 %v110, %v137
    %v139 = vrot.slane %v59, %v138
    %v140 = vlaneseq
    %v141 = vshrl.u32 %v140, 7
    %v142 = vsub.s32 %v115, %v141
    %v143 = vrot.slane %v62, %v142
    %v144 = vsel %vm120, %v143, %v139
    %v145 = vlaneseq
    %v146 = vshrl.u32 %v145, 7
    %v147 = vsub.s32 %v122, %v146
    %v148 = vrot.slane %v65, %v147
    %v149 = vsel %vm127, %v148, %v144
    %v150 = vlaneseq
    %v151 = vshrl.u32 %v150, 7
    %v152 = vsub.s32 %v129, %v151
    %v153 = vrot.slane %v68, %v152
    %v154 = vsel %vm134, %v153, %v149
    %v155 = vlaneseq
    %v156 = vshrl.u32 %v155, 7
    %v157 = vsub.s32 %v110, %v156
    %v158 = vrot.slane %v71, %v157
    %v159 = vlaneseq
    %v160 = vshrl.u32 %v159, 7
    %v161 = vsub.s32 %v115, %v160
    %v162 = vrot.slane %v74, %v161
    %v163 = vsel %vm120, %v162, %v158
    %v164 = vlaneseq
    %v165 = vshrl.u32 %v164, 7
    %v166 = vsub.s32 %v122, %v165
    %v167 = vrot.slane %v77, %v166
    %v168 = vsel %vm127, %v167, %v163
    %v169 = vlaneseq
    %v170 = vshrl.u32 %v169, 7
    %v171 = vsub.s32 %v129, %v170
    %v172 = vrot.slane %v80, %v171
    %v173 = vsel %vm134, %v172, %v168
    %v174 = vlaneseq
    %v175 = vshrl.u32 %v174, 7
    %v176 = vsub.s32 %v110, %v175
    %v177 = vrot.slane %v83, %v176
    %v178 = vlaneseq
    %v179 = vshrl.u32 %v178, 7
    %v180 = vsub.s32 %v115, %v179
    %v181 = vrot.slane %v86, %v180
    %v182 = vsel %vm120, %v181, %v177
    %v183 = vlaneseq
    %v184 = vshrl.u32 %v183, 7
    %v185 = vsub.s32 %v122, %v184
    %v186 = vrot.slane %v89, %v185
    %v187 = vsel %vm127, %v186, %v182
    %v188 = vlaneseq
    %v189 = vshrl.u32 %v188, 7
    %v190 = vsub.s32 %v129, %v189
    %v191 = vrot.slane %v92, %v190
    %v192 = vsel %vm134, %v191, %v187
    %vm193 = vcmask 1041409
    %v194 = vsel %vm193, %v154, %v135
    %vm195 = vcmask 1042434
    %v196 = vsel %vm195, %v173, %v194
    %vm197 = vcmask 1043459
    %v198 = vsel %vm197, %v192, %v196
    %v200 = vadd.f32 %v27, %v198
    %vm201 = vcmask 257024
    %202 = vst.msk [vmem:[#allocation2] sm:$0xf] %vm201, %v200
    // Predicated region
    $region26: #{tpu_custom_call.1} parent=1 // pred_check
      %p203 = pneg %p21
    $region27: #{tpu_custom_call.1} parent=1 // pred_check_branch
      %205 = sbr.rel (%p203) target = $region29
    $region28: #{tpu_custom_call.1} parent=1 // pred_region
      %v206 = vld [vmem:[#allocation2] sm:$0xf]
      %v207 = vmul.f32 %v206, 0.0625
      %v208 = vld [vmem:[%s1] sm:$0xff]
      %v209 = vld [vmem:[%s1 + $0x8] sm:$0xff]
      %v210 = vld [vmem:[%s1 + $0x10] sm:$0xff]
      %v211 = vld [vmem:[%s1 + $0x18] sm:$0xff]
      %v212 = vld [vmem:[%s2] sm:$0x1]
      %v214 = vlaneseq
      %v215 = vshrl.u32 %v214, 7
      %v216 = vsub.s32 0, %v215
      %v217 = vrot.slane %v212, %v216
      %vm219 = vcmask 261120
      %v221 = vsel %vm219, %v207, 0
      %223 = vmatprep.subr.mxu0 0.0
      %224 = vmatpush1.msra.mxu0 0.0
      %225 = vmatprep.subr.mxu0 0.0
      %226 = vmatpush1.msra.mxu0 0.0
      %227 = vmatprep.subr.mxu0 0.0
      %228 = vmatpush1.msra.mxu0 0.0
      %229 = vmatprep.subr.mxu0 0.0
      %230 = vmatpush1.msra.mxu0 0.0
      %231 = vmatprep.subr.mxu0 0.0
      %232 = vmatpush1.msra.mxu0 0.0
      %233 = vmatprep.subr.mxu0 0.0
      %234 = vmatpush1.msra.mxu0 0.0
      %235 = vmatprep.subr.mxu0 0.0
      %236 = vmatpush1.msra.mxu0 0.0
      %237 = vmatprep.subr.mxu0 0.0
      %238 = vmatpush1.msra.mxu0 0.0
      %239 = vmatprep.subr.mxu0 0.0
      %240 = vmatpush1.msra.mxu0 0.0
      %241 = vmatprep.subr.mxu0 0.0
      %242 = vmatpush1.msra.mxu0 0.0
      %243 = vmatprep.subr.mxu0 0.0
      %244 = vmatpush1.msra.mxu0 0.0
      %245 = vmatprep.subr.mxu0 0.0
      %246 = vmatpush1.msra.mxu0 0.0
      %247 = vmatprep.subr.mxu0 0.0
      %248 = vmatpush1.msra.mxu0 %v211
      %249 = vmatprep.subr.mxu0 0.0
      %250 = vmatpush1.msra.mxu0 %v210
      %251 = vmatprep.subr.mxu0 0.0
      %252 = vmatpush1.msra.mxu0 %v209
      %253 = vmatprep.subr.mxu0 0.0
      %254 = vmatpush1.msra.mxu0 %v208
      %255 = vmatprep.subr.mxu0 0.0
      %256 = vmatpush2.msra.mxu0 0.0
      %257 = vmatprep.subr.mxu0 0.0
      %258 = vmatpush2.msra.mxu0 0.0
      %259 = vmatprep.subr.mxu0 0.0
      %260 = vmatpush2.msra.mxu0 0.0
      %261 = vmatprep.subr.mxu0 0.0
      %262 = vmatpush2.msra.mxu0 0.0
      %263 = vmatprep.subr.mxu0 0.0
      %264 = vmatpush2.msra.mxu0 0.0
      %265 = vmatprep.subr.mxu0 0.0
      %266 = vmatpush2.msra.mxu0 0.0
      %267 = vmatprep.subr.mxu0 0.0
      %268 = vmatpush2.msra.mxu0 0.0
      %269 = vmatprep.subr.mxu0 0.0
      %270 = vmatpush2.msra.mxu0 0.0
      %271 = vmatprep.subr.mxu0 0.0
      %272 = vmatpush2.msra.mxu0 0.0
      %273 = vmatprep.subr.mxu0 0.0
      %274 = vmatpush2.msra.mxu0 0.0
      %275 = vmatprep.subr.mxu0 0.0
      %276 = vmatpush2.msra.mxu0 0.0
      %277 = vmatprep.subr.mxu0 0.0
      %278 = vmatpush2.msra.mxu0 0.0
      %279 = vmatprep.subr.mxu0 0.0
      %280 = vmatpush2.msra.mxu0 0.0
      %281 = vmatprep.subr.mxu0 0.0
      %282 = vmatpush2.msra.mxu0 0.0
      %283 = vmatprep.subr.mxu0 0.0
      %284 = vmatpush2.msra.mxu0 0.0
      %285 = vmatprep.subr.mxu0 0.0
      %286 = vmatpush2.msra.mxu0 0.0
      %287 = vmatprep.mubr.f32.mxu0 0.0
      %288 = vmatmul.mubr.f32.gmra.mxu0 %v221
      %v289 = vpop.f32.mrf.mxu0
      %v290 = vadd.f32 %v217, %v289
      %v291 = vpop.f32.mrf.mxu0
      %292 = vdwg.mxu0
      %v293 = vmax.f32 %v290, 0.0
      %v294 = vld [vmem:[%s3] sm:$0xff]
      %v295 = vld [vmem:[%s4] sm:$0x1]
      %v297 = vlaneseq
      %v298 = vshrl.u32 %v297, 7
      %v299 = vsub.s32 0, %v298
      %v300 = vrot.slane %v295, %v299
      %vm302 = vcmask 64512
      %v304 = vsel %vm302, %v293, 0
      %306 = vmatprep.subr.mxu0 0.0
      %307 = vmatpush1.msra.mxu0 0.0
      %308 = vmatprep.subr.mxu0 0.0
      %309 = vmatpush1.msra.mxu0 0.0
      %310 = vmatprep.subr.mxu0 0.0
      %311 = vmatpush1.msra.mxu0 0.0
      %312 = vmatprep.subr.mxu0 0.0
      %313 = vmatpush1.msra.mxu0 0.0
      %314 = vmatprep.subr.mxu0 0.0
      %315 = vmatpush1.msra.mxu0 0.0
      %316 = vmatprep.subr.mxu0 0.0
      %317 = vmatpush1.msra.mxu0 0.0
      %318 = vmatprep.subr.mxu0 0.0
      %319 = vmatpush1.msra.mxu0 0.0
      %320 = vmatprep.subr.mxu0 0.0
      %321 = vmatpush1.msra.mxu0 0.0
      %322 = vmatprep.subr.mxu0 0.0
      %323 = vmatpush1.msra.mxu0 0.0
      %324 = vmatprep.subr.mxu0 0.0
      %325 = vmatpush1.msra.mxu0 0.0
      %326 = vmatprep.subr.mxu0 0.0
      %327 = vmatpush1.msra.mxu0 0.0
      %328 = vmatprep.subr.mxu0 0.0
      %329 = vmatpush1.msra.mxu0 0.0
      %330 = vmatprep.subr.mxu0 0.0
      %331 = vmatpush1.msra.mxu0 0.0
      %332 = vmatprep.subr.mxu0 0.0
      %333 = vmatpush1.msra.mxu0 0.0
      %334 = vmatprep.subr.mxu0 0.0
      %335 = vmatpush1.msra.mxu0 0.0
      %336 = vmatprep.subr.mxu0 0.0
      %337 = vmatpush1.msra.mxu0 %v294
      %338 = vmatprep.subr.mxu0 0.0
      %339 = vmatpush2.msra.mxu0 0.0
      %340 = vmatprep.subr.mxu0 0.0
      %341 = vmatpush2.msra.mxu0 0.0
      %342 = vmatprep.subr.mxu0 0.0
      %343 = vmatpush2.msra.mxu0 0.0
      %344 = vmatprep.subr.mxu0 0.0
      %345 = vmatpush2.msra.mxu0 0.0
      %346 = vmatprep.subr.mxu0 0.0
      %347 = vmatpush2.msra.mxu0 0.0
      %348 = vmatprep.subr.mxu0 0.0
      %349 = vmatpush2.msra.mxu0 0.0
      %350 = vmatprep.subr.mxu0 0.0
      %351 = vmatpush2.msra.mxu0 0.0
      %352 = vmatprep.subr.mxu0 0.0
      %353 = vmatpush2.msra.mxu0 0.0
      %354 = vmatprep.subr.mxu0 0.0
      %355 = vmatpush2.msra.mxu0 0.0
      %356 = vmatprep.subr.mxu0 0.0
      %357 = vmatpush2.msra.mxu0 0.0
      %358 = vmatprep.subr.mxu0 0.0
      %359 = vmatpush2.msra.mxu0 0.0
      %360 = vmatprep.subr.mxu0 0.0
      %361 = vmatpush2.msra.mxu0 0.0
      %362 = vmatprep.subr.mxu0 0.0
      %363 = vmatpush2.msra.mxu0 0.0
      %364 = vmatprep.subr.mxu0 0.0
      %365 = vmatpush2.msra.mxu0 0.0
      %366 = vmatprep.subr.mxu0 0.0
      %367 = vmatpush2.msra.mxu0 0.0
      %368 = vmatprep.subr.mxu0 0.0
      %369 = vmatpush2.msra.mxu0 0.0
      %370 = vmatprep.mubr.f32.mxu0 0.0
      %371 = vmatmul.mubr.f32.gmra.mxu0 %v304
      %v372 = vpop.f32.mrf.mxu0
      %v373 = vadd.f32 %v300, %v372
      %v374 = vpop.f32.mrf.mxu0
      %375 = vdwg.mxu0
      %v376 = vxor.u32 %v373, 2147483648
      %v377 = vmul.f32 %v376, 1.442695
      %v378 = vpow.pop %v377
      %v379 = vadd.f32 %v378, 1.0
      %v380 = vrcp.pop %v379
      %v381 = vmul.f32 1.0, %v380
      %382 = vst.msk [vmem:[#allocation3] sm:$0xf] %vm201, %v381
    $region29: #{tpu_custom_call.1} parent=1 // pred_fallthru
      _
    // Predicated region
    $region30: #{tpu_custom_call.1} parent=1 // pred_check
      _
    $region31: #{tpu_custom_call.1} parent=1 // pred_check_branch
      %384 = sbr.rel (0) target = $region33
    $region32: #{tpu_custom_call.1} parent=1 // pred_region
      %s386 = ssub.s32 64, 64
      %387 = vsyncadd [#allocation4], %s386
      %s389 = sshll.u32 [#allocation3], 4
      %s390 = int_to_ptr.vmem [resolvable:$true] %s389
      %392 = dma.vmem_to_hbm [thread:$0]  %s390, 64, %s5, [#allocation4]
    $region33: #{tpu_custom_call.1} parent=1 // pred_fallthru
      _
    // Predicated region
    $region34: #{tpu_custom_call.1} parent=1 // pred_check
      _
    $region35: #{tpu_custom_call.1} parent=1 // pred_check_branch
      %394 = sbr.rel (0) target = $region37
    $region36: #{tpu_custom_call.1} parent=1 // pred_region
      %395 = dma.done [#allocation4], 64
    $region37: #{tpu_custom_call.1} parent=1 // pred_fallthru
      _
    %396 = vsyncpa [#allocation4], 1

</llo_original>
